<compile_context>
chip_gen: v7x
topology: tpu7x:2x2x1
jax: 0.10.0
libtpu: 0.0.40
codegen_flags: <defaults>
</compile_context>

<pallas_src>
from functools import partial

import numpy as np
import jax
import jax.numpy as jnp
from jax.experimental import pallas as pl
from jax.experimental.pallas import tpu as pltpu

LANES = 128
# ~2 MiB per block buffer; 4x that (in+out, double-buffered) fits the scoped
# VMEM default on all TPU generations (16 MiB v5e, 32 MiB v6e/v7x).
_TARGET_BLOCK_BYTES = 2 << 20


def _copy_kernel(x_ref, o_ref):
    # Identity copy of the current (block_rows, 128) lane-dense tile.
    o_ref[...] = x_ref[...]


def _resolve_shape(total_elems, shape):
    """Resolve a torch.view-style shape (may contain one -1)."""
    shape = list(shape)
    neg = [i for i, s in enumerate(shape) if s == -1]
    if len(neg) > 1:
        raise ValueError("only one dimension can be -1")
    if neg:
        known = 1
        for i, s in enumerate(shape):
            if i != neg[0]:
                known *= s
        if known == 0 or total_elems % known != 0:
            raise ValueError(f"cannot reshape {total_elems} elements into {shape}")
        shape[neg[0]] = total_elems // known
    if int(np.prod(shape)) != total_elems:
        raise ValueError(f"shape {shape} invalid for {total_elems} elements")
    return tuple(int(s) for s in shape)


@partial(jax.jit, static_argnums=(1,))
def _pallas_view_impl(x, target_shape):
    total = int(np.prod(x.shape))
    itemsize = jnp.dtype(x.dtype).itemsize

    # Native packed sublane multiple: 8 (32-bit), 16 (16-bit), 32 (8-bit).
    packing = max(8, 32 // itemsize)
    # Rows per block targeting ~2 MiB; always a multiple of `packing`.
    max_block_rows = max(packing, _TARGET_BLOCK_BYTES // (LANES * itemsize))
    max_block_rows -= max_block_rows % packing

    rows = -(-total // LANES)          # cdiv(total, 128)
    padded = rows * LANES

    flat = jnp.reshape(x, (total,))
    if padded != total:
        # Pad only up to the next multiple of 128 elements (<= 127 elems);
        # the partial sublane block is handled by Pallas masking.
        flat = jnp.pad(flat, (0, padded - total))
    slab = jnp.reshape(flat, (rows, LANES))

    if rows <= max_block_rows:
        # Single full-extent block: always layout-legal, one grid step.
        block_rows = rows
    else:
        # Multi-MiB blocks; last (partial) block is masked by Pallas.
        block_rows = max_block_rows
    grid = (pl.cdiv(rows, block_rows),)

    out_slab = pl.pallas_call(
        _copy_kernel,
        out_shape=jax.ShapeDtypeStruct((rows, LANES), x.dtype),
        grid_spec=pltpu.PrefetchScalarGridSpec(
            num_scalar_prefetch=0,
            grid=grid,
            in_specs=[pl.BlockSpec((block_rows, LANES), lambda i: (i, 0))],
            out_specs=pl.BlockSpec((block_rows, LANES), lambda i: (i, 0)),
        ),
        compiler_params=pltpu.CompilerParams(
            dimension_semantics=("parallel",)
        ),
        cost_estimate=pl.CostEstimate(
            flops=0, transcendentals=0,
            bytes_accessed=2 * total * itemsize),
    )(slab)

    if padded != total:
        out_flat = jnp.reshape(out_slab, (padded,))[:total]
    else:
        out_flat = jnp.reshape(out_slab, (total,))
    return jnp.reshape(out_flat, target_shape)


def pallas_view(x, *shape):
    """Equivalent of PyTorch View(*shape).forward(x); the element copy is
    performed inside a Pallas TPU kernel on a lane-dense (rows, 128) slab."""
    total = int(np.prod(x.shape))
    target_shape = _resolve_shape(total, shape)
    if total == 0:
        return jnp.reshape(x, target_shape)
    return _pallas_view_impl(x, target_shape)


class View:
    """JAX/Pallas mirror of the PyTorch View module."""

    def __init__(self, *shape):
        self.shape = shape

    def __call__(self, input_tensor):
        return pallas_view(input_tensor, *self.shape)


if __name__ == "__main__":
    key = jax.random.PRNGKey(0)
    # Small NCHW-style input consistent with a generator feature map.
    x = jax.random.normal(key, (2, 4, 16, 16), dtype=jnp.float32)

    # View(2, -1): flatten each batch element, exactly like
    # input_tensor.view(2, -1) in PyTorch.
    y = jax.block_until_ready(View(2, -1)(x))
    ref = np.asarray(x).reshape(2, -1)
    assert y.shape == (2, 4 * 16 * 16), y.shape
    assert y.dtype == x.dtype
    np.testing.assert_array_equal(np.asarray(y), ref)

    # Non -1 target shape.
    y2 = jax.block_until_ready(View(4, 16, 32)(x))
    np.testing.assert_array_equal(np.asarray(y2), np.asarray(x).reshape(4, 16, 32))

    # Lane-unaligned element count (exercises the 128-element pad path).
    x3 = jax.random.normal(jax.random.PRNGKey(1), (3, 5, 7), dtype=jnp.float32)
    y3 = jax.block_until_ready(View(-1,)(x3))
    np.testing.assert_array_equal(np.asarray(y3), np.asarray(x3).reshape(-1))

    # Narrow dtype (bf16) with unaligned count: packed-sublane block handling.
    x4 = jax.random.normal(jax.random.PRNGKey(2), (2, 3, 50), dtype=jnp.bfloat16)
    y4 = jax.block_until_ready(View(6, 50)(x4))
    np.testing.assert_array_equal(np.asarray(y4), np.asarray(x4).reshape(6, 50))

    # Larger multi-block case (exercises the tiled grid path).
    x5 = jax.random.normal(jax.random.PRNGKey(3), (8, 64, 2048), dtype=jnp.float32)
    y5 = jax.block_until_ready(View(-1, 256)(x5))
    np.testing.assert_array_equal(np.asarray(y5), np.asarray(x5).reshape(-1, 256))

    print("KERNEL_OK")
</pallas_src>

<mosaic_0001>
module attributes {stable_mosaic.version = 11 : i64} {
  func.func @_copy_kernel(%arg0: i32, %arg1: memref<16x128xf32, #tpu.memory_space<vmem>>, %arg2: memref<16x128xf32, #tpu.memory_space<vmem>>) attributes {dimension_semantics = [#tpu.dimension_semantics<parallel>], iteration_bounds = array<i64: 1>, scalar_prefetch = 0 : i64, scratch_operands = 0 : i64, tpu.core_type = #tpu.core_type<tc>, window_params = [{transform_indices = @transform_0, window_bounds = array<i64: 16, 128>}, {transform_indices = @transform_1, window_bounds = array<i64: 16, 128>}]} {
    %c0 = arith.constant 0 : index
    %c0_0 = arith.constant 0 : index
    %0 = vector.load %arg1[%c0, %c0_0] : memref<16x128xf32, #tpu.memory_space<vmem>>, vector<16x128xf32>
    %c0_1 = arith.constant 0 : index
    %c0_2 = arith.constant 0 : index
    %1 = vector.load %arg2[%c0_1, %c0_2] : memref<16x128xf32, #tpu.memory_space<vmem>>, vector<16x128xf32>
    tpu.vector_store %arg2[%c0_1, %c0_2], %0 {strides = array<i32>} : memref<16x128xf32, #tpu.memory_space<vmem>>, vector<16x128xf32>,
    return
  }
  func.func @transform_0(%arg0: i32) -> (i32, i32) {
    %c0_i32 = arith.constant 0 : i32
    %c0_i32_0 = arith.constant 0 : i32
    return %arg0, %c0_i32 : i32, i32
  }
  func.func @transform_1(%arg0: i32) -> (i32, i32) {
    %c0_i32 = arith.constant 0 : i32
    %c0_i32_0 = arith.constant 0 : i32
    return %arg0, %c0_i32 : i32, i32
  }
}

</mosaic_0001>

<llo_original>
// kernel: _pallas_view_impl.1
$region0: #{_pallas_view_impl.1}
  #allocation0 [shape = 'u32[]', space=smem, size = 0x4, offset = 0x4, fixed_abs, tag = 'smem constant byte address 0x4 - core index']
  #allocation1 [shape = 'u32[144,128]{1,0:T(1,128)}', space=vmem, size = 0x12000, scoped, tag = 'internal scratch']
  %s0 = inlined_call_operand.vmem [shape: f32[16,128], index: 0, kind: input, shape index: {}]
  %s1 = inlined_call_operand.vmem [shape: f32[16,128], index: 1, kind: output, shape index: {}]
  %s2 = sld [smem:[#allocation0]]
  $region14: #{_pallas_view_impl.1} parent=0
    _
  %s4 = ssub.s32 1, %s2
  %s5 = scalar_select 0, %s4, %s2
  // Predicated region
  $region2: #{_pallas_view_impl.1} parent=0 // pred_check
    _
  $region3: #{_pallas_view_impl.1} parent=0 // pred_check_branch
    %7 = sbr.rel (0) target = $region5
  $region4: #{_pallas_view_impl.1} parent=0 // pred_region
    _
  $region5: #{_pallas_view_impl.1} parent=0 // pred_fallthru
    _
  %v8 = vld [vmem:[%s0] sm:$0xff]
  %v9 = vld [vmem:[%s0 + $0x8] sm:$0xff]
  %10 = vst [vmem:[%s1] sm:$0xff] %v8
  %11 = vst [vmem:[%s1 + $0x8] sm:$0xff] %v9
  // Predicated region
  $region6: #{_pallas_view_impl.1} parent=0 // pred_check
    _
  $region7: #{_pallas_view_impl.1} parent=0 // pred_check_branch
    %13 = sbr.rel (0) target = $region9
  $region8: #{_pallas_view_impl.1} parent=0 // pred_region
    _
  $region9: #{_pallas_view_impl.1} parent=0 // pred_fallthru
    _
  // Predicated region
  $region10: #{_pallas_view_impl.1} parent=0 // pred_check
    _
  $region11: #{_pallas_view_impl.1} parent=0 // pred_check_branch
    %15 = sbr.rel (0) target = $region13
  $region12: #{_pallas_view_impl.1} parent=0 // pred_region
    _
  $region13: #{_pallas_view_impl.1} parent=0 // pred_fallthru
    _

</llo_original>
